<compile_context>
chip_gen: v5e
topology: v5e:2x2
jax: 0.10.0
libtpu: 0.0.40
codegen_flags: <defaults>
</compile_context>

<pallas_src>
import jax
import jax.numpy as jnp
from jax.experimental import pallas as pl
from jax.experimental.pallas import tpu as pltpu


def heuristic_net_kernel(folded_ref, states_ref, out_ref):
    # folded_ref: (1, D)  f32        — weight-folded heuristic bank (resident row)
    # states_ref: (TB, D) native dt  — TB flattened boards (cast to f32 in-kernel)
    # out_ref:    (TB, 1) f32        — per-state heuristic scores
    x = states_ref[...].astype(jnp.float32)                     # VPU cast (narrow dtypes OK)
    out_ref[...] = jnp.sum(x * folded_ref[...], axis=1, keepdims=True)


def prepare_heuristic_params(heuristic_weight, heuristic_bank):
    """Fold the per-heuristic weight into the linear feature bank once, at init.

    out(s) = w . (H @ s) = (w @ H) . s   ->   folded row of shape (1, D), f32.
    """
    w = jnp.asarray(heuristic_weight, jnp.float32)               # (K,)
    h = jnp.asarray(heuristic_bank, jnp.float32)                 # (K, D)
    folded = w @ h                                               # (D,)
    return folded.reshape(1, -1)                                 # (1, D)


def _pick_batch_tile(B, D):
    """Pick TB (multiple of 128) so the f32 states block is ~2 MiB, never
    absurdly larger than B.  Safe on v5e (16 MiB scoped VMEM) through v7x."""
    target_bytes = 2 * 1024 * 1024
    tb = max(128, (target_bytes // (D * 4)) // 128 * 128)
    tb = min(tb, 4096)
    b_rounded = ((B + 127) // 128) * 128
    return max(128, min(tb, b_rounded))


@jax.jit
def heuristic_net_forward(folded_row, states):
    """folded_row: (1, D) f32 from prepare_heuristic_params; states: (B, R, C) any dtype.

    Returns (B,) f32 — one heuristic score per state.
    """
    B = states.shape[0]
    D = folded_row.shape[-1]

    # Flatten only (free bitcast in XLA); NO astype / pad / transpose passes here —
    # the kernel streams the native dtype and casts on the fly.
    states_flat = states.reshape(B, D)

    TB = _pick_batch_tile(B, D)
    grid = (pl.cdiv(B, TB),)                                     # ragged last block is fine

    out = pl.pallas_call(
        heuristic_net_kernel,
        out_shape=jax.ShapeDtypeStruct((B, 1), jnp.float32),
        grid_spec=pltpu.PrefetchScalarGridSpec(
            num_scalar_prefetch=0,
            grid=grid,
            in_specs=[
                pl.BlockSpec((1, D), lambda i: (0, 0)),          # folded bank, resident
                pl.BlockSpec((TB, D), lambda i: (i, 0)),         # TB states per grid step
            ],
            out_specs=pl.BlockSpec((TB, 1), lambda i: (i, 0)),
        ),
        compiler_params=pltpu.CompilerParams(
            dimension_semantics=("parallel",),                   # shard batch across TCs (v7x)
        ),
    )(folded_row, states_flat)

    # Padded / ragged trailing rows (if any) hold unspecified data; slice them off.
    return out[:B, 0]


if __name__ == "__main__":
    # Small shapes consistent with the module: board-like states + a few heuristics.
    num_heuristics = 8
    board_r, board_c = 16, 16
    D = board_r * board_c
    B = 200  # not a multiple of the tile; exercises the ragged last block path

    key = jax.random.PRNGKey(0)
    k_states, k_bank = jax.random.split(key)

    # nn.Parameter(torch.ones(num_heuristics)) -> deterministic ones init.
    heuristic_weight = jnp.ones((num_heuristics,), dtype=jnp.float32)

    # TODO(synk): game.heuristics are arbitrary Python callables; they are modeled here
    # as a fixed linear feature bank (one row per heuristic) so the forward is a tensor op.
    heuristic_bank = jax.random.normal(k_bank, (num_heuristics, D), dtype=jnp.float32)

    states = jax.random.normal(k_states, (B, board_r, board_c), dtype=jnp.float32)

    # Weight fold + cast done once, outside the per-call path.
    folded_row = prepare_heuristic_params(heuristic_weight, heuristic_bank)

    out = heuristic_net_forward(folded_row, states)
    out = jax.block_until_ready(out)

    # Pure-JAX reference of the original per-state semantics.
    hv = states.reshape(B, D) @ heuristic_bank.T                 # (B, K) heuristic values
    ref = hv @ heuristic_weight                                  # (B,)
    assert out.shape == (B,), out.shape
    assert jnp.allclose(out, ref, rtol=1e-4, atol=1e-3), (out[:4], ref[:4])

    print("KERNEL_OK")
</pallas_src>

<mosaic_0001>
module attributes {stable_mosaic.version = 11 : i64} {
  func.func @heuristic_net_kernel(%arg0: i32, %arg1: memref<1x256xf32, #tpu.memory_space<vmem>>, %arg2: memref<256x256xf32, #tpu.memory_space<vmem>>, %arg3: memref<256x1xf32, #tpu.memory_space<vmem>>) attributes {dimension_semantics = [#tpu.dimension_semantics<parallel>], iteration_bounds = array<i64: 1>, scalar_prefetch = 0 : i64, scratch_operands = 0 : i64, tpu.core_type = #tpu.core_type<tc>, window_params = [{pipeline_mode = #tpu.pipeline_mode<synchronous>, transform_indices = @transform_0, window_bounds = array<i64: 1, 256>}, {transform_indices = @transform_1, window_bounds = array<i64: 256, 256>}, {transform_indices = @transform_2, window_bounds = array<i64: 256, 1>}]} {
    %c0 = arith.constant 0 : index
    %c0_0 = arith.constant 0 : index
    %0 = vector.load %arg2[%c0, %c0_0] : memref<256x256xf32, #tpu.memory_space<vmem>>, vector<256x256xf32>
    %c0_1 = arith.constant 0 : index
    %c0_2 = arith.constant 0 : index
    %1 = vector.load %arg1[%c0_1, %c0_2] : memref<1x256xf32, #tpu.memory_space<vmem>>, vector<1x256xf32>
    %2 = vector.broadcast %1 : vector<1x256xf32> to vector<256x256xf32>
    %3 = arith.mulf %0, %2 : vector<256x256xf32>
    %cst = arith.constant dense<0.000000e+00> : vector<256xf32>
    %4 = vector.multi_reduction <add>, %3, %cst [1] : vector<256x256xf32> to vector<256xf32>
    %5 = vector.shape_cast %4 : vector<256xf32> to vector<256x1xf32>
    %c0_3 = arith.constant 0 : index
    %c0_4 = arith.constant 0 : index
    %6 = vector.load %arg3[%c0_3, %c0_4] : memref<256x1xf32, #tpu.memory_space<vmem>>, vector<256x1xf32>
    tpu.vector_store %arg3[%c0_3, %c0_4], %5 {strides = array<i32>} : memref<256x1xf32, #tpu.memory_space<vmem>>, vector<256x1xf32>,
    return
  }
  func.func @transform_0(%arg0: i32) -> (i32, i32) {
    %c0_i32 = arith.constant 0 : i32
    %c0_i32_0 = arith.constant 0 : i32
    %c0_i32_1 = arith.constant 0 : i32
    return %c0_i32, %c0_i32_0 : i32, i32
  }
  func.func @transform_1(%arg0: i32) -> (i32, i32) {
    %c0_i32 = arith.constant 0 : i32
    %c0_i32_0 = arith.constant 0 : i32
    return %arg0, %c0_i32 : i32, i32
  }
  func.func @transform_2(%arg0: i32) -> (i32, i32) {
    %c0_i32 = arith.constant 0 : i32
    %c0_i32_0 = arith.constant 0 : i32
    return %arg0, %c0_i32 : i32, i32
  }
}

</mosaic_0001>

<llo_original>
// kernel: heuristic_net_forward.1
$region0: #{heuristic_net_forward.1}
  #allocation0 [shape = 'u32[]', space=smem, size = 0x4, offset = 0x4, fixed_abs, tag = 'smem constant byte address 0x4 - core index']
  #allocation1 [shape = 'u32[72,128]{1,0:T(1,128)}', space=vmem, size = 0x9000, scoped, tag = 'internal scratch']
  %s0 = inlined_call_operand.vmem [shape: f32[1,256], index: 0, kind: input, shape index: {}]
  %s1 = inlined_call_operand.vmem [shape: f32[200,256], index: 1, kind: input, shape index: {}]
  %s2 = inlined_call_operand.vmem [shape: f32[200,1], index: 2, kind: output, shape index: {}]
  %s3 = sld [smem:[#allocation0]]
  $region52: #{heuristic_net_forward.1} parent=0
    _
  %s5 = ssub.s32 1, %s3
  %s6 = scalar_select 0, %s5, %s3
  $region1: #{heuristic_net_forward.1} parent=0
    #allocation2 [shape = 'u8[131072]{0}', space=vmem, size = 0x20000, scoped, tag = 'output window, operand 0, single buffered']
    // Predicated region
    $region2: #{heuristic_net_forward.1} parent=1 // pred_check
      _
    $region3: #{heuristic_net_forward.1} parent=1 // pred_check_branch
      %8 = sbr.rel (0) target = $region5
    $region4: #{heuristic_net_forward.1} parent=1 // pred_region
      _
    $region5: #{heuristic_net_forward.1} parent=1 // pred_fallthru
      _
    // Predicated region
    $region6: #{heuristic_net_forward.1} parent=1 // pred_check
      _
    $region7: #{heuristic_net_forward.1} parent=1 // pred_check_branch
      %10 = sbr.rel (0) target = $region9
    $region8: #{heuristic_net_forward.1} parent=1 // pred_region
      _
    $region9: #{heuristic_net_forward.1} parent=1 // pred_fallthru
      _
    %v11 = vld [vmem:[%s1] sm:$0xff]
    %v12 = vld [vmem:[%s1 + $0x8] sm:$0xff]
    %v13 = vld [vmem:[%s1 + $0x10] sm:$0xff]
    %v14 = vld [vmem:[%s1 + $0x18] sm:$0xff]
    %v15 = vld [vmem:[%s1 + $0x20] sm:$0xff]
    %v16 = vld [vmem:[%s1 + $0x28] sm:$0xff]
    %v17 = vld [vmem:[%s1 + $0x30] sm:$0xff]
    %v18 = vld [vmem:[%s1 + $0x38] sm:$0xff]
    %v19 = vld [vmem:[%s1 + $0x40] sm:$0xff]
    %v20 = vld [vmem:[%s1 + $0x48] sm:$0xff]
    %v21 = vld [vmem:[%s1 + $0x50] sm:$0xff]
    %v22 = vld [vmem:[%s1 + $0x58] sm:$0xff]
    %v23 = vld [vmem:[%s1 + $0x60] sm:$0xff]
    %v24 = vld [vmem:[%s1 + $0x68] sm:$0xff]
    %v25 = vld [vmem:[%s1 + $0x70] sm:$0xff]
    %v26 = vld [vmem:[%s1 + $0x78] sm:$0xff]
    %v27 = vld [vmem:[%s1 + $0x80] sm:$0xff]
    %v28 = vld [vmem:[%s1 + $0x88] sm:$0xff]
    %v29 = vld [vmem:[%s1 + $0x90] sm:$0xff]
    %v30 = vld [vmem:[%s1 + $0x98] sm:$0xff]
    %v31 = vld [vmem:[%s1 + $0xa0] sm:$0xff]
    %v32 = vld [vmem:[%s1 + $0xa8] sm:$0xff]
    %v33 = vld [vmem:[%s1 + $0xb0] sm:$0xff]
    %v34 = vld [vmem:[%s1 + $0xb8] sm:$0xff]
    %v35 = vld [vmem:[%s1 + $0xc0] sm:$0xff]
    %v36 = vld [vmem:[%s1 + $0xc8] sm:$0xff]
    %v37 = vld [vmem:[%s1 + $0xd0] sm:$0xff]
    %v38 = vld [vmem:[%s1 + $0xd8] sm:$0xff]
    %v39 = vld [vmem:[%s1 + $0xe0] sm:$0xff]
    %v40 = vld [vmem:[%s1 + $0xe8] sm:$0xff]
    %v41 = vld [vmem:[%s1 + $0xf0] sm:$0xff]
    %v42 = vld [vmem:[%s1 + $0xf8] sm:$0xff]
    %v43 = vld [vmem:[%s1 + $0x100] sm:$0xff]
    %v44 = vld [vmem:[%s1 + $0x108] sm:$0xff]
    %v45 = vld [vmem:[%s1 + $0x110] sm:$0xff]
    %v46 = vld [vmem:[%s1 + $0x118] sm:$0xff]
    %v47 = vld [vmem:[%s1 + $0x120] sm:$0xff]
    %v48 = vld [vmem:[%s1 + $0x128] sm:$0xff]
    %v49 = vld [vmem:[%s1 + $0x130] sm:$0xff]
    %v50 = vld [vmem:[%s1 + $0x138] sm:$0xff]
    %v51 = vld [vmem:[%s1 + $0x140] sm:$0xff]
    %v52 = vld [vmem:[%s1 + $0x148] sm:$0xff]
    %v53 = vld [vmem:[%s1 + $0x150] sm:$0xff]
    %v54 = vld [vmem:[%s1 + $0x158] sm:$0xff]
    %v55 = vld [vmem:[%s1 + $0x160] sm:$0xff]
    %v56 = vld [vmem:[%s1 + $0x168] sm:$0xff]
    %v57 = vld [vmem:[%s1 + $0x170] sm:$0xff]
    %v58 = vld [vmem:[%s1 + $0x178] sm:$0xff]
    %v59 = vld [vmem:[%s1 + $0x180] sm:$0xff]
    %v60 = vld [vmem:[%s1 + $0x188] sm:$0xff]
    %v61 = vld [vmem:[%s1 + $0x190] sm:$0xff]
    %v62 = vld [vmem:[%s1 + $0x198] sm:$0xff]
    %v63 = vld [vmem:[%s1 + $0x1a0] sm:$0xff]
    %v64 = vld [vmem:[%s1 + $0x1a8] sm:$0xff]
    %v65 = vld [vmem:[%s1 + $0x1b0] sm:$0xff]
    %v66 = vld [vmem:[%s1 + $0x1b8] sm:$0xff]
    %v67 = vld [vmem:[%s1 + $0x1c0] sm:$0xff]
    %v68 = vld [vmem:[%s1 + $0x1c8] sm:$0xff]
    %v69 = vld [vmem:[%s1 + $0x1d0] sm:$0xff]
    %v70 = vld [vmem:[%s1 + $0x1d8] sm:$0xff]
    %v71 = vld [vmem:[%s1 + $0x1e0] sm:$0xff]
    %v72 = vld [vmem:[%s1 + $0x1e8] sm:$0xff]
    %v73 = vld [vmem:[%s1 + $0x1f0] sm:$0xff]
    %v74 = vld [vmem:[%s1 + $0x1f8] sm:$0xff]
    %v75 = vld [vmem:[%s0] sm:$0x3]
    %v77 = vperm.slane %v75, 0
    %v78 = vperm.slane %v75, 1
    %v81 = vmul.f32 %v11, %v77
    %v82 = vmul.f32 %v12, %v78
    %v83 = vmul.f32 %v13, %v77
    %v84 = vmul.f32 %v14, %v78
    %v85 = vmul.f32 %v15, %v77
    %v86 = vmul.f32 %v16, %v78
    %v87 = vmul.f32 %v17, %v77
    %v88 = vmul.f32 %v18, %v78
    %v89 = vmul.f32 %v19, %v77
    %v90 = vmul.f32 %v20, %v78
    %v91 = vmul.f32 %v21, %v77
    %v92 = vmul.f32 %v22, %v78
    %v93 = vmul.f32 %v23, %v77
    %v94 = vmul.f32 %v24, %v78
    %v95 = vmul.f32 %v25, %v77
    %v96 = vmul.f32 %v26, %v78
    %v97 = vmul.f32 %v27, %v77
    %v98 = vmul.f32 %v28, %v78
    %v99 = vmul.f32 %v29, %v77
    %v100 = vmul.f32 %v30, %v78
    %v101 = vmul.f32 %v31, %v77
    %v102 = vmul.f32 %v32, %v78
    %v103 = vmul.f32 %v33, %v77
    %v104 = vmul.f32 %v34, %v78
    %v105 = vmul.f32 %v35, %v77
    %v106 = vmul.f32 %v36, %v78
    %v107 = vmul.f32 %v37, %v77
    %v108 = vmul.f32 %v38, %v78
    %v109 = vmul.f32 %v39, %v77
    %v110 = vmul.f32 %v40, %v78
    %v111 = vmul.f32 %v41, %v77
    %v112 = vmul.f32 %v42, %v78
    %v113 = vmul.f32 %v43, %v77
    %v114 = vmul.f32 %v44, %v78
    %v115 = vmul.f32 %v45, %v77
    %v116 = vmul.f32 %v46, %v78
    %v117 = vmul.f32 %v47, %v77
    %v118 = vmul.f32 %v48, %v78
    %v119 = vmul.f32 %v49, %v77
    %v120 = vmul.f32 %v50, %v78
    %v121 = vmul.f32 %v51, %v77
    %v122 = vmul.f32 %v52, %v78
    %v123 = vmul.f32 %v53, %v77
    %v124 = vmul.f32 %v54, %v78
    %v125 = vmul.f32 %v55, %v77
    %v126 = vmul.f32 %v56, %v78
    %v127 = vmul.f32 %v57, %v77
    %v128 = vmul.f32 %v58, %v78
    %v129 = vmul.f32 %v59, %v77
    %v130 = vmul.f32 %v60, %v78
    %v131 = vmul.f32 %v61, %v77
    %v132 = vmul.f32 %v62, %v78
    %v133 = vmul.f32 %v63, %v77
    %v134 = vmul.f32 %v64, %v78
    %v135 = vmul.f32 %v65, %v77
    %v136 = vmul.f32 %v66, %v78
    %v137 = vmul.f32 %v67, %v77
    %v138 = vmul.f32 %v68, %v78
    %v139 = vmul.f32 %v69, %v77
    %v140 = vmul.f32 %v70, %v78
    %v141 = vmul.f32 %v71, %v77
    %v142 = vmul.f32 %v72, %v78
    %v143 = vmul.f32 %v73, %v77
    %v144 = vmul.f32 %v74, %v78
    %v145 = vadd.f32 %v81, %v82
    %146 = vadd.xlane.f32.xlu0 %v145
    %v147 = vpop.xlane.xlu0 %146
    %v148 = vadd.f32 %v83, %v84
    %149 = vadd.xlane.f32.xlu0 %v148
    %v150 = vpop.xlane.xlu0 %149
    %v151 = vadd.f32 %v85, %v86
    %152 = vadd.xlane.f32.xlu0 %v151
    %v153 = vpop.xlane.xlu0 %152
    %v154 = vadd.f32 %v87, %v88
    %155 = vadd.xlane.f32.xlu0 %v154
    %v156 = vpop.xlane.xlu0 %155
    %v157 = vadd.f32 %v89, %v90
    %158 = vadd.xlane.f32.xlu0 %v157
    %v159 = vpop.xlane.xlu0 %158
    %v160 = vadd.f32 %v91, %v92
    %161 = vadd.xlane.f32.xlu0 %v160
    %v162 = vpop.xlane.xlu0 %161
    %v163 = vadd.f32 %v93, %v94
    %164 = vadd.xlane.f32.xlu0 %v163
    %v165 = vpop.xlane.xlu0 %164
    %v166 = vadd.f32 %v95, %v96
    %167 = vadd.xlane.f32.xlu0 %v166
    %v168 = vpop.xlane.xlu0 %167
    %v169 = vadd.f32 %v97, %v98
    %170 = vadd.xlane.f32.xlu0 %v169
    %v171 = vpop.xlane.xlu0 %170
    %v172 = vadd.f32 %v99, %v100
    %173 = vadd.xlane.f32.xlu0 %v172
    %v174 = vpop.xlane.xlu0 %173
    %v175 = vadd.f32 %v101, %v102
    %176 = vadd.xlane.f32.xlu0 %v175
    %v177 = vpop.xlane.xlu0 %176
    %v178 = vadd.f32 %v103, %v104
    %179 = vadd.xlane.f32.xlu0 %v178
    %v180 = vpop.xlane.xlu0 %179
    %v181 = vadd.f32 %v105, %v106
    %182 = vadd.xlane.f32.xlu0 %v181
    %v183 = vpop.xlane.xlu0 %182
    %v184 = vadd.f32 %v107, %v108
    %185 = vadd.xlane.f32.xlu0 %v184
    %v186 = vpop.xlane.xlu0 %185
    %v187 = vadd.f32 %v109, %v110
    %188 = vadd.xlane.f32.xlu0 %v187
    %v189 = vpop.xlane.xlu0 %188
    %v190 = vadd.f32 %v111, %v112
    %191 = vadd.xlane.f32.xlu0 %v190
    %v192 = vpop.xlane.xlu0 %191
    %v193 = vadd.f32 %v113, %v114
    %194 = vadd.xlane.f32.xlu0 %v193
    %v195 = vpop.xlane.xlu0 %194
    %v196 = vadd.f32 %v115, %v116
    %197 = vadd.xlane.f32.xlu0 %v196
    %v198 = vpop.xlane.xlu0 %197
    %v199 = vadd.f32 %v117, %v118
    %200 = vadd.xlane.f32.xlu0 %v199
    %v201 = vpop.xlane.xlu0 %200
    %v202 = vadd.f32 %v119, %v120
    %203 = vadd.xlane.f32.xlu0 %v202
    %v204 = vpop.xlane.xlu0 %203
    %v205 = vadd.f32 %v121, %v122
    %206 = vadd.xlane.f32.xlu0 %v205
    %v207 = vpop.xlane.xlu0 %206
    %v208 = vadd.f32 %v123, %v124
    %209 = vadd.xlane.f32.xlu0 %v208
    %v210 = vpop.xlane.xlu0 %209
    %v211 = vadd.f32 %v125, %v126
    %212 = vadd.xlane.f32.xlu0 %v211
    %v213 = vpop.xlane.xlu0 %212
    %v214 = vadd.f32 %v127, %v128
    %215 = vadd.xlane.f32.xlu0 %v214
    %v216 = vpop.xlane.xlu0 %215
    %v217 = vadd.f32 %v129, %v130
    %218 = vadd.xlane.f32.xlu0 %v217
    %v219 = vpop.xlane.xlu0 %218
    %v220 = vadd.f32 %v131, %v132
    %221 = vadd.xlane.f32.xlu0 %v220
    %v222 = vpop.xlane.xlu0 %221
    %v223 = vadd.f32 %v133, %v134
    %224 = vadd.xlane.f32.xlu0 %v223
    %v225 = vpop.xlane.xlu0 %224
    %v226 = vadd.f32 %v135, %v136
    %227 = vadd.xlane.f32.xlu0 %v226
    %v228 = vpop.xlane.xlu0 %227
    %v229 = vadd.f32 %v137, %v138
    %230 = vadd.xlane.f32.xlu0 %v229
    %v231 = vpop.xlane.xlu0 %230
    %v232 = vadd.f32 %v139, %v140
    %233 = vadd.xlane.f32.xlu0 %v232
    %v234 = vpop.xlane.xlu0 %233
    %v235 = vadd.f32 %v141, %v142
    %236 = vadd.xlane.f32.xlu0 %v235
    %v237 = vpop.xlane.xlu0 %236
    %v238 = vadd.f32 %v143, %v144
    %239 = vadd.xlane.f32.xlu0 %v238
    %v240 = vpop.xlane.xlu0 %239
    %vm241 = vcmask 7168
    %242 = vst.msk [vmem:[#allocation2] sm:$0xff] %vm241, %v147
    %243 = vst.msk [vmem:[#allocation2 + $0x8] sm:$0xff] %vm241, %v150
    %244 = vst.msk [vmem:[#allocation2 + $0x10] sm:$0xff] %vm241, %v153
    %245 = vst.msk [vmem:[#allocation2 + $0x18] sm:$0xff] %vm241, %v156
    %246 = vst.msk [vmem:[#allocation2 + $0x20] sm:$0xff] %vm241, %v159
    %247 = vst.msk [vmem:[#allocation2 + $0x28] sm:$0xff] %vm241, %v162
    %248 = vst.msk [vmem:[#allocation2 + $0x30] sm:$0xff] %vm241, %v165
    %249 = vst.msk [vmem:[#allocation2 + $0x38] sm:$0xff] %vm241, %v168
    %250 = vst.msk [vmem:[#allocation2 + $0x40] sm:$0xff] %vm241, %v171
    %251 = vst.msk [vmem:[#allocation2 + $0x48] sm:$0xff] %vm241, %v174
    %252 = vst.msk [vmem:[#allocation2 + $0x50] sm:$0xff] %vm241, %v177
    %253 = vst.msk [vmem:[#allocation2 + $0x58] sm:$0xff] %vm241, %v180
    %254 = vst.msk [vmem:[#allocation2 + $0x60] sm:$0xff] %vm241, %v183
    %255 = vst.msk [vmem:[#allocation2 + $0x68] sm:$0xff] %vm241, %v186
    %256 = vst.msk [vmem:[#allocation2 + $0x70] sm:$0xff] %vm241, %v189
    %257 = vst.msk [vmem:[#allocation2 + $0x78] sm:$0xff] %vm241, %v192
    %258 = vst.msk [vmem:[#allocation2 + $0x80] sm:$0xff] %vm241, %v195
    %259 = vst.msk [vmem:[#allocation2 + $0x88] sm:$0xff] %vm241, %v198
    %260 = vst.msk [vmem:[#allocation2 + $0x90] sm:$0xff] %vm241, %v201
    %261 = vst.msk [vmem:[#allocation2 + $0x98] sm:$0xff] %vm241, %v204
    %262 = vst.msk [vmem:[#allocation2 + $0xa0] sm:$0xff] %vm241, %v207
    %263 = vst.msk [vmem:[#allocation2 + $0xa8] sm:$0xff] %vm241, %v210
    %264 = vst.msk [vmem:[#allocation2 + $0xb0] sm:$0xff] %vm241, %v213
    %265 = vst.msk [vmem:[#allocation2 + $0xb8] sm:$0xff] %vm241, %v216
    %266 = vst.msk [vmem:[#allocation2 + $0xc0] sm:$0xff] %vm241, %v219
    %267 = vst.msk [vmem:[#allocation2 + $0xc8] sm:$0xff] %vm241, %v222
    %268 = vst.msk [vmem:[#allocation2 + $0xd0] sm:$0xff] %vm241, %v225
    %269 = vst.msk [vmem:[#allocation2 + $0xd8] sm:$0xff] %vm241, %v228
    %270 = vst.msk [vmem:[#allocation2 + $0xe0] sm:$0xff] %vm241, %v231
    %271 = vst.msk [vmem:[#allocation2 + $0xe8] sm:$0xff] %vm241, %v234
    %272 = vst.msk [vmem:[#allocation2 + $0xf0] sm:$0xff] %vm241, %v237
    %273 = vst.msk [vmem:[#allocation2 + $0xf8] sm:$0xff] %vm241, %v240
    // Predicated region
    $region10: #{heuristic_net_forward.1} parent=1 // pred_check
      _
    $region11: #{heuristic_net_forward.1} parent=1 // pred_check_branch
      %275 = sbr.rel (0) target = $region13
    $region12: #{heuristic_net_forward.1} parent=1 // pred_region
      // Predicated region
      $region14: #{heuristic_net_forward.1} parent=12 // pred_check
        _
      $region15: #{heuristic_net_forward.1} parent=12 // pred_check_branch
        %277 = sbr.rel (0) target = $region17
      $region16: #{heuristic_net_forward.1} parent=12 // pred_region
        // Predicated region
        $region18: #{heuristic_net_forward.1} parent=16 // pred_check
          _
        $region19: #{heuristic_net_forward.1} parent=16 // pred_check_branch
          %279 = sbr.rel (0) target = $region21
        $region20: #{heuristic_net_forward.1} parent=16 // pred_region
          // Predicated region
          $region33: #{heuristic_net_forward.1} parent=20 // pred_check
            _
          $region34: #{heuristic_net_forward.1} parent=20 // pred_check_branch
            %343 = sbr.rel (0) target = $region36
          $region35: #{heuristic_net_forward.1} parent=20 // pred_region
            loop: start=0, step=1, limit=1
            $region37: #{heuristic_net_forward.1} parent=35 // loop_pre_header
              _
            $region38: #{heuristic_net_forward.1} parent=35 // loop_header
              %s345 = sphi 0, %s349
              %p346 = scmp.ge.s32.totalorder %s345, 1
              %s350 = sphi [#allocation2], [#allocation2]
              %s351 = sphi %s2, %s2
            $region39: #{heuristic_net_forward.1} parent=35 // loop_header_branch
              %348 = sbr.rel (%p346) target = $region43
            $region40: #{heuristic_net_forward.1} parent=35 // loop_body
              %v352 = vld [vmem:[%s350] sm:$0xff]
              %353 = vst [vmem:[%s351] sm:$0xff] %v352
              %v354 = vld [vmem:[%s350 + $0x8] sm:$0xff]
              %355 = vst [vmem:[%s351 + $0x8] sm:$0xff] %v354
              %v356 = vld [vmem:[%s350 + $0x10] sm:$0xff]
              %357 = vst [vmem:[%s351 + $0x10] sm:$0xff] %v356
              %v358 = vld [vmem:[%s350 + $0x18] sm:$0xff]
              %359 = vst [vmem:[%s351 + $0x18] sm:$0xff] %v358
              %v360 = vld [vmem:[%s350 + $0x20] sm:$0xff]
              %361 = vst [vmem:[%s351 + $0x20] sm:$0xff] %v360
              %v362 = vld [vmem:[%s350 + $0x28] sm:$0xff]
              %363 = vst [vmem:[%s351 + $0x28] sm:$0xff] %v362
              %v364 = vld [vmem:[%s350 + $0x30] sm:$0xff]
              %365 = vst [vmem:[%s351 + $0x30] sm:$0xff] %v364
              %v366 = vld [vmem:[%s350 + $0x38] sm:$0xff]
              %367 = vst [vmem:[%s351 + $0x38] sm:$0xff] %v366
              %v368 = vld [vmem:[%s350 + $0x40] sm:$0xff]
              %369 = vst [vmem:[%s351 + $0x40] sm:$0xff] %v368
              %v370 = vld [vmem:[%s350 + $0x48] sm:$0xff]
              %371 = vst [vmem:[%s351 + $0x48] sm:$0xff] %v370
              %v372 = vld [vmem:[%s350 + $0x50] sm:$0xff]
              %373 = vst [vmem:[%s351 + $0x50] sm:$0xff] %v372
              %v374 = vld [vmem:[%s350 + $0x58] sm:$0xff]
              %375 = vst [vmem:[%s351 + $0x58] sm:$0xff] %v374
              %v376 = vld [vmem:[%s350 + $0x60] sm:$0xff]
              %377 = vst [vmem:[%s351 + $0x60] sm:$0xff] %v376
              %v378 = vld [vmem:[%s350 + $0x68] sm:$0xff]
              %379 = vst [vmem:[%s351 + $0x68] sm:$0xff] %v378
              %v380 = vld [vmem:[%s350 + $0x70] sm:$0xff]
              %381 = vst [vmem:[%s351 + $0x70] sm:$0xff] %v380
              %v382 = vld [vmem:[%s350 + $0x78] sm:$0xff]
              %383 = vst [vmem:[%s351 + $0x78] sm:$0xff] %v382
              %v384 = vld [vmem:[%s350 + $0x80] sm:$0xff]
              %385 = vst [vmem:[%s351 + $0x80] sm:$0xff] %v384
              %v386 = vld [vmem:[%s350 + $0x88] sm:$0xff]
              %387 = vst [vmem:[%s351 + $0x88] sm:$0xff] %v386
              %v388 = vld [vmem:[%s350 + $0x90] sm:$0xff]
              %389 = vst [vmem:[%s351 + $0x90] sm:$0xff] %v388
              %v390 = vld [vmem:[%s350 + $0x98] sm:$0xff]
              %391 = vst [vmem:[%s351 + $0x98] sm:$0xff] %v390
              %v392 = vld [vmem:[%s350 + $0xa0] sm:$0xff]
              %393 = vst [vmem:[%s351 + $0xa0] sm:$0xff] %v392
              %v394 = vld [vmem:[%s350 + $0xa8] sm:$0xff]
              %395 = vst [vmem:[%s351 + $0xa8] sm:$0xff] %v394
              %v396 = vld [vmem:[%s350 + $0xb0] sm:$0xff]
              %397 = vst [vmem:[%s351 + $0xb0] sm:$0xff] %v396
              %v398 = vld [vmem:[%s350 + $0xb8] sm:$0xff]
              %399 = vst [vmem:[%s351 + $0xb8] sm:$0xff] %v398
              %v400 = vld [vmem:[%s350 + $0xc0] sm:$0xff]
              %401 = vst [vmem:[%s351 + $0xc0] sm:$0xff] %v400
            $region41: #{heuristic_net_forward.1} parent=35 // loop_footer
              %s349 = sadd.s32 1, %s345
            $region42: #{heuristic_net_forward.1} parent=35 // loop_footer_branch
              %344 = sbr.rel target = $region38
            $region43: #{heuristic_net_forward.1} parent=35 // loop_exit
              _
          $region36: #{heuristic_net_forward.1} parent=20 // pred_fallthru
            _
          // Predicated region
          $region44: #{heuristic_net_forward.1} parent=20 // pred_check
            _
          $region45: #{heuristic_net_forward.1} parent=20 // pred_check_branch
            %403 = sbr.rel target = $region47
          $region46: #{heuristic_net_forward.1} parent=20 // pred_region
            _
          $region47: #{heuristic_net_forward.1} parent=20 // pred_fallthru
            _
        $region21: #{heuristic_net_forward.1} parent=16 // pred_fallthru
          _
        // Predicated region
        $region22: #{heuristic_net_forward.1} parent=16 // pred_check
          _
        $region23: #{heuristic_net_forward.1} parent=16 // pred_check_branch
          %281 = sbr.rel target = $region25
        $region24: #{heuristic_net_forward.1} parent=16 // pred_region
          %s283 = ssub.s32 256, 1
          loop: start=0, step=1, limit=1
          $region26: #{heuristic_net_forward.1} parent=24 // loop_pre_header
            _
          $region27: #{heuristic_net_forward.1} parent=24 // loop_header
            %s285 = sphi 0, %s289
            %p286 = scmp.ge.s32.totalorder %s285, 1
            %s290 = sphi [#allocation2], [#allocation2]
            %s291 = sphi %s2, %s2
          $region28: #{heuristic_net_forward.1} parent=24 // loop_header_branch
            %288 = sbr.rel (%p286) target = $region32
          $region29: #{heuristic_net_forward.1} parent=24 // loop_body
            %v292 = vld [vmem:[%s290] sm:%s283]
            %293 = vst [vmem:[%s291] sm:%s283] %v292
            %v294 = vld [vmem:[%s290 + $0x8] sm:%s283]
            %295 = vst [vmem:[%s291 + $0x8] sm:%s283] %v294
            %v296 = vld [vmem:[%s290 + $0x10] sm:%s283]
            %297 = vst [vmem:[%s291 + $0x10] sm:%s283] %v296
            %v298 = vld [vmem:[%s290 + $0x18] sm:%s283]
            %299 = vst [vmem:[%s291 + $0x18] sm:%s283] %v298
            %v300 = vld [vmem:[%s290 + $0x20] sm:%s283]
            %301 = vst [vmem:[%s291 + $0x20] sm:%s283] %v300
            %v302 = vld [vmem:[%s290 + $0x28] sm:%s283]
            %303 = vst [vmem:[%s291 + $0x28] sm:%s283] %v302
            %v304 = vld [vmem:[%s290 + $0x30] sm:%s283]
            %305 = vst [vmem:[%s291 + $0x30] sm:%s283] %v304
            %v306 = vld [vmem:[%s290 + $0x38] sm:%s283]
            %307 = vst [vmem:[%s291 + $0x38] sm:%s283] %v306
            %v308 = vld [vmem:[%s290 + $0x40] sm:%s283]
            %309 = vst [vmem:[%s291 + $0x40] sm:%s283] %v308
            %v310 = vld [vmem:[%s290 + $0x48] sm:%s283]
            %311 = vst [vmem:[%s291 + $0x48] sm:%s283] %v310
            %v312 = vld [vmem:[%s290 + $0x50] sm:%s283]
            %313 = vst [vmem:[%s291 + $0x50] sm:%s283] %v312
            %v314 = vld [vmem:[%s290 + $0x58] sm:%s283]
            %315 = vst [vmem:[%s291 + $0x58] sm:%s283] %v314
            %v316 = vld [vmem:[%s290 + $0x60] sm:%s283]
            %317 = vst [vmem:[%s291 + $0x60] sm:%s283] %v316
            %v318 = vld [vmem:[%s290 + $0x68] sm:%s283]
            %319 = vst [vmem:[%s291 + $0x68] sm:%s283] %v318
            %v320 = vld [vmem:[%s290 + $0x70] sm:%s283]
            %321 = vst [vmem:[%s291 + $0x70] sm:%s283] %v320
            %v322 = vld [vmem:[%s290 + $0x78] sm:%s283]
            %323 = vst [vmem:[%s291 + $0x78] sm:%s283] %v322
            %v324 = vld [vmem:[%s290 + $0x80] sm:%s283]
            %325 = vst [vmem:[%s291 + $0x80] sm:%s283] %v324
            %v326 = vld [vmem:[%s290 + $0x88] sm:%s283]
            %327 = vst [vmem:[%s291 + $0x88] sm:%s283] %v326
            %v328 = vld [vmem:[%s290 + $0x90] sm:%s283]
            %329 = vst [vmem:[%s291 + $0x90] sm:%s283] %v328
            %v330 = vld [vmem:[%s290 + $0x98] sm:%s283]
            %331 = vst [vmem:[%s291 + $0x98] sm:%s283] %v330
            %v332 = vld [vmem:[%s290 + $0xa0] sm:%s283]
            %333 = vst [vmem:[%s291 + $0xa0] sm:%s283] %v332
            %v334 = vld [vmem:[%s290 + $0xa8] sm:%s283]
            %335 = vst [vmem:[%s291 + $0xa8] sm:%s283] %v334
            %v336 = vld [vmem:[%s290 + $0xb0] sm:%s283]
            %337 = vst [vmem:[%s291 + $0xb0] sm:%s283] %v336
            %v338 = vld [vmem:[%s290 + $0xb8] sm:%s283]
            %339 = vst [vmem:[%s291 + $0xb8] sm:%s283] %v338
            %v340 = vld [vmem:[%s290 + $0xc0] sm:%s283]
            %341 = vst [vmem:[%s291 + $0xc0] sm:%s283] %v340
          $region30: #{heuristic_net_forward.1} parent=24 // loop_footer
            %s289 = sadd.s32 1, %s285
          $region31: #{heuristic_net_forward.1} parent=24 // loop_footer_branch
            %284 = sbr.rel target = $region27
          $region32: #{heuristic_net_forward.1} parent=24 // loop_exit
            _
        $region25: #{heuristic_net_forward.1} parent=16 // pred_fallthru
          _
      $region17: #{heuristic_net_forward.1} parent=12 // pred_fallthru
        _
      %404 = vnop
    $region13: #{heuristic_net_forward.1} parent=1 // pred_fallthru
      _
    // Predicated region
    $region48: #{heuristic_net_forward.1} parent=1 // pred_check
      _
    $region49: #{heuristic_net_forward.1} parent=1 // pred_check_branch
      %406 = sbr.rel (0) target = $region51
    $region50: #{heuristic_net_forward.1} parent=1 // pred_region
      _
    $region51: #{heuristic_net_forward.1} parent=1 // pred_fallthru
      _

</llo_original>
